<compile_context>
chip_gen: v6e
topology: v6e:2x2x1
jax: 0.10.0
libtpu: 0.0.40
codegen_flags: <defaults>
</compile_context>

<pallas_src>
import jax
import jax.numpy as jnp
from jax.experimental import pallas as pl
from jax.experimental.pallas import tpu as pltpu


def attention_pool_kernel(x_ref, w_attn_ref, b_attn_ref, w_fc_t_ref, b_fc_ref, o_ref):
    # x_ref:      (TB, C, T)   batch block
    # w_attn_ref: (1, C)       attention Linear weight (VMEM, resident)
    # b_attn_ref: (1,)         attention Linear bias   (SMEM scalar)
    # w_fc_t_ref: (C, O)       fc Linear weight, pre-transposed in the wrapper
    # b_fc_ref:   (1, O)       fc Linear bias
    # o_ref:      (TB, O)      output block
    x = x_ref[...]                                   # (TB, C, T)
    w_attn = w_attn_ref[...]                         # (1, C)

    # Attention scores: broadcast multiply over C then sublane reduce over C (VPU/XLU),
    # no 1-row MXU matmul.  scores[b, t] = sum_c x[b,c,t] * w_attn[c] + b_attn
    scores = jnp.sum(x * w_attn[:, :, None], axis=1) + b_attn_ref[0]   # (TB, T)

    # Softmax over the time axis (lane axis).
    m = jnp.max(scores, axis=-1, keepdims=True)                        # (TB, 1)
    e = jnp.exp(scores - m)                                            # (TB, T)
    denom = jnp.sum(e, axis=-1, keepdims=True)                         # (TB, 1)
    alpha = e * pl.reciprocal(denom, approx=True)                      # (TB, T)

    # Weighted pooling: broadcast multiply over T then lane reduce over T.
    # weighted[b, c] = sum_t x[b,c,t] * alpha[b,t]
    weighted = jnp.sum(x * alpha[:, None, :], axis=2)                  # (TB, C)

    # Final FC on the MXU with a batched LHS; no in-kernel transpose.
    out = jnp.dot(weighted, w_fc_t_ref[...], preferred_element_type=jnp.float32)
    o_ref[...] = (out + b_fc_ref[...]).astype(o_ref.dtype)             # (TB, O)


def attention_pooling_net(x, w_attn, b_attn, w_fc, b_fc, *, batch_block=None):
    """x: (B, C, T) float32. Returns (B, O) float32."""
    B, C, T = x.shape
    O = w_fc.shape[0]

    # Batch blocking: process the whole batch per grid step when it is small
    # (the demo case), otherwise split evenly along the batch axis.
    if batch_block is None:
        batch_block = B
    assert B % batch_block == 0, "batch_block must divide the batch size"
    n_blocks = B // batch_block

    x = x.astype(jnp.float32)
    w_attn2 = w_attn.reshape(1, C).astype(jnp.float32)   # torch Linear(C,1).weight is (1, C)
    b_attn1 = b_attn.reshape(1).astype(jnp.float32)      # scalar bias -> SMEM
    w_fc_t = jnp.transpose(w_fc.astype(jnp.float32))     # (C, O): transpose once in wrapper
    b_fc2 = b_fc.reshape(1, O).astype(jnp.float32)

    return pl.pallas_call(
        attention_pool_kernel,
        out_shape=jax.ShapeDtypeStruct((B, O), jnp.float32),
        grid_spec=pltpu.PrefetchScalarGridSpec(
            num_scalar_prefetch=0,
            grid=(n_blocks,),
            in_specs=[
                pl.BlockSpec((batch_block, C, T), lambda i: (i, 0, 0)),   # x batch block
                pl.BlockSpec((1, C), lambda i: (0, 0)),                   # w_attn (resident)
                pl.BlockSpec(memory_space=pltpu.MemorySpace.SMEM),        # b_attn scalar
                pl.BlockSpec((C, O), lambda i: (0, 0)),                   # w_fc^T (resident)
                pl.BlockSpec((1, O), lambda i: (0, 0)),                   # b_fc (resident)
            ],
            out_specs=pl.BlockSpec((batch_block, O), lambda i: (i, 0)),
        ),
        compiler_params=pltpu.CompilerParams(
            dimension_semantics=("parallel",),
        ),
    )(x, w_attn2, b_attn1, w_fc_t, b_fc2)


def reference(x, w_attn, b_attn, w_fc, b_fc):
    # Pure-JAX reference mirroring the torch forward exactly.
    scores = jnp.einsum("bct,c->bt", x, w_attn.reshape(-1)) + b_attn.reshape(())  # (B, T)
    alpha = jax.nn.softmax(scores, axis=1)                                        # (B, T)
    weighted = jnp.einsum("bct,bt->bc", x, alpha)                                 # (B, C)
    return weighted @ w_fc.T + b_fc                                               # (B, O)


if __name__ == "__main__":
    # Small shapes consistent with the module: batch=2, channels=8, timestep=16, output=8.
    B, C, T, O = 2, 8, 16, 8

    key = jax.random.PRNGKey(0)
    kx, k1, k2, k3, k4 = jax.random.split(key, 5)

    x = jax.random.normal(kx, (B, C, T), dtype=jnp.float32)

    # Deterministic parameter init (uniform, like torch's default Linear init scale).
    bound_attn = 1.0 / jnp.sqrt(C)
    w_attn = jax.random.uniform(k1, (1, C), minval=-bound_attn, maxval=bound_attn,
                                dtype=jnp.float32)
    b_attn = jax.random.uniform(k2, (1,), minval=-bound_attn, maxval=bound_attn,
                                dtype=jnp.float32)
    bound_fc = 1.0 / jnp.sqrt(C)
    w_fc = jax.random.uniform(k3, (O, C), minval=-bound_fc, maxval=bound_fc,
                              dtype=jnp.float32)
    b_fc = jax.random.uniform(k4, (O,), minval=-bound_fc, maxval=bound_fc,
                              dtype=jnp.float32)

    out = attention_pooling_net(x, w_attn, b_attn, w_fc, b_fc)
    out = jax.block_until_ready(out)

    ref = reference(x, w_attn, b_attn, w_fc, b_fc)
    assert out.shape == (B, O)
    # Slightly looser tolerance than before: pl.reciprocal(approx=True) in the
    # softmax denominator perturbs results at the ~1e-4 relative level.
    assert jnp.allclose(out, ref, atol=2e-3, rtol=2e-3), (out, ref)

    print("KERNEL_OK")
</pallas_src>

<mosaic_0001>
module attributes {stable_mosaic.version = 11 : i64} {
  func.func @attention_pool_kernel(%arg0: i32, %arg1: memref<2x8x16xf32, #tpu.memory_space<vmem>>, %arg2: memref<1x8xf32, #tpu.memory_space<vmem>>, %arg3: memref<1xf32, #tpu.memory_space<smem>>, %arg4: memref<8x8xf32, #tpu.memory_space<vmem>>, %arg5: memref<1x8xf32, #tpu.memory_space<vmem>>, %arg6: memref<2x8xf32, #tpu.memory_space<vmem>>) attributes {dimension_semantics = [#tpu.dimension_semantics<parallel>], iteration_bounds = array<i64: 1>, scalar_prefetch = 0 : i64, scratch_operands = 0 : i64, tpu.core_type = #tpu.core_type<tc>, window_params = [{transform_indices = @transform_0, window_bounds = array<i64: 2, 8, 16>}, {pipeline_mode = #tpu.pipeline_mode<synchronous>, transform_indices = @transform_1, window_bounds = array<i64: 1, 8>}, {transform_indices = @transform_2, window_bounds = array<i64: 1>}, {pipeline_mode = #tpu.pipeline_mode<synchronous>, transform_indices = @transform_3, window_bounds = array<i64: 8, 8>}, {pipeline_mode = #tpu.pipeline_mode<synchronous>, transform_indices = @transform_4, window_bounds = array<i64: 1, 8>}, {transform_indices = @transform_5, window_bounds = array<i64: 2, 8>}]} {
    %c0 = arith.constant 0 : index
    %c0_0 = arith.constant 0 : index
    %c0_1 = arith.constant 0 : index
    %0 = vector.load %arg1[%c0, %c0_0, %c0_1] : memref<2x8x16xf32, #tpu.memory_space<vmem>>, vector<2x8x16xf32>
    %c0_2 = arith.constant 0 : index
    %c0_3 = arith.constant 0 : index
    %1 = vector.load %arg2[%c0_2, %c0_3] : memref<1x8xf32, #tpu.memory_space<vmem>>, vector<1x8xf32>
    %2 = vector.shape_cast %1 : vector<1x8xf32> to vector<1x8x1xf32>
    %3 = vector.broadcast %2 : vector<1x8x1xf32> to vector<2x8x16xf32>
    %4 = arith.mulf %0, %3 : vector<2x8x16xf32>
    %cst = arith.constant dense<0.000000e+00> : vector<2x16xf32>
    %5 = vector.multi_reduction <add>, %4, %cst [1] : vector<2x8x16xf32> to vector<2x16xf32>
    %c0_4 = arith.constant 0 : index
    %6 = memref.load %arg3[%c0_4] : memref<1xf32, #tpu.memory_space<smem>>
    %7 = vector.broadcast %6 : f32 to vector<2x16xf32>
    %8 = arith.addf %5, %7 : vector<2x16xf32>
    %cst_5 = arith.constant dense<0xFF800000> : vector<2xf32>
    %9 = vector.multi_reduction <maximumf>, %8, %cst_5 [1] : vector<2x16xf32> to vector<2xf32>
    %10 = vector.shape_cast %9 : vector<2xf32> to vector<2x1xf32>
    %11 = vector.broadcast %10 : vector<2x1xf32> to vector<2x16xf32>
    %12 = arith.subf %8, %11 : vector<2x16xf32>
    %13 = math.exp %12 : vector<2x16xf32>
    %cst_6 = arith.constant dense<0.000000e+00> : vector<2xf32>
    %14 = vector.multi_reduction <add>, %13, %cst_6 [1] : vector<2x16xf32> to vector<2xf32>
    %15 = vector.shape_cast %14 : vector<2xf32> to vector<2x1xf32>
    %16 = tpu.reciprocal %15 {approx = true} : vector<2x1xf32> -> vector<2x1xf32>
    %17 = vector.broadcast %16 : vector<2x1xf32> to vector<2x16xf32>
    %18 = arith.mulf %13, %17 : vector<2x16xf32>
    %19 = vector.shape_cast %18 : vector<2x16xf32> to vector<2x1x16xf32>
    %20 = vector.broadcast %19 : vector<2x1x16xf32> to vector<2x8x16xf32>
    %21 = arith.mulf %0, %20 : vector<2x8x16xf32>
    %cst_7 = arith.constant dense<0.000000e+00> : vector<2x8xf32>
    %22 = vector.multi_reduction <add>, %21, %cst_7 [2] : vector<2x8x16xf32> to vector<2x8xf32>
    %c0_8 = arith.constant 0 : index
    %c0_9 = arith.constant 0 : index
    %23 = vector.load %arg4[%c0_8, %c0_9] : memref<8x8xf32, #tpu.memory_space<vmem>>, vector<8x8xf32>
    %cst_10 = arith.constant dense<0.000000e+00> : vector<2x8xf32>
    %24 = tpu.matmul %22, %23, %cst_10 {dimension_numbers = #tpu.dot_dimension_numbers<[1], [0], [0], [1], [0, 0, 1, 1], [], []>} : vector<2x8xf32>, vector<8x8xf32>, vector<2x8xf32> -> vector<2x8xf32>
    %c0_11 = arith.constant 0 : index
    %c0_12 = arith.constant 0 : index
    %25 = vector.load %arg5[%c0_11, %c0_12] : memref<1x8xf32, #tpu.memory_space<vmem>>, vector<1x8xf32>
    %26 = vector.broadcast %25 : vector<1x8xf32> to vector<2x8xf32>
    %27 = arith.addf %24, %26 : vector<2x8xf32>
    %c0_13 = arith.constant 0 : index
    %c0_14 = arith.constant 0 : index
    %28 = vector.load %arg6[%c0_13, %c0_14] : memref<2x8xf32, #tpu.memory_space<vmem>>, vector<2x8xf32>
    tpu.vector_store %arg6[%c0_13, %c0_14], %27 {strides = array<i32>} : memref<2x8xf32, #tpu.memory_space<vmem>>, vector<2x8xf32>,
    return
  }
  func.func @transform_0(%arg0: i32) -> (i32, i32, i32) {
    %c0_i32 = arith.constant 0 : i32
    %c0_i32_0 = arith.constant 0 : i32
    %c0_i32_1 = arith.constant 0 : i32
    return %arg0, %c0_i32, %c0_i32_0 : i32, i32, i32
  }
  func.func @transform_1(%arg0: i32) -> (i32, i32) {
    %c0_i32 = arith.constant 0 : i32
    %c0_i32_0 = arith.constant 0 : i32
    %c0_i32_1 = arith.constant 0 : i32
    return %c0_i32, %c0_i32_0 : i32, i32
  }
  func.func @transform_2(%arg0: i32) -> i32 {
    %c0_i32 = arith.constant 0 : i32
    %c0_i32_0 = arith.constant 0 : i32
    return %c0_i32 : i32
  }
  func.func @transform_3(%arg0: i32) -> (i32, i32) {
    %c0_i32 = arith.constant 0 : i32
    %c0_i32_0 = arith.constant 0 : i32
    %c0_i32_1 = arith.constant 0 : i32
    return %c0_i32, %c0_i32_0 : i32, i32
  }
  func.func @transform_4(%arg0: i32) -> (i32, i32) {
    %c0_i32 = arith.constant 0 : i32
    %c0_i32_0 = arith.constant 0 : i32
    %c0_i32_1 = arith.constant 0 : i32
    return %c0_i32, %c0_i32_0 : i32, i32
  }
  func.func @transform_5(%arg0: i32) -> (i32, i32) {
    %c0_i32 = arith.constant 0 : i32
    %c0_i32_0 = arith.constant 0 : i32
    return %arg0, %c0_i32 : i32, i32
  }
}

</mosaic_0001>

<llo_original>
// kernel: tpu_custom_call.1
$region0: #{tpu_custom_call.1}
  #allocation0 [shape = 'u32[]', space=smem, size = 0x4, offset = 0x4, fixed_abs, tag = 'smem constant byte address 0x4 - core index']
  #allocation1 [shape = 'u32[144,128]{1,0:T(1,128)}', space=vmem, size = 0x12000, scoped, tag = 'internal scratch']
  #allocation2 [shape = 'f32[1]{0:T(128)S(6)}', space=smem, size = 0x200, scoped, tag = 'scoped memory for tpu_custom_call.1']
  %s0 = inlined_call_operand.hbm [shape: f32[2,8,16], index: 0, kind: input, shape index: {}]
  %s1 = inlined_call_operand.vmem [shape: f32[1,8], index: 1, kind: input, shape index: {}]
  %s2 = inlined_call_operand.<no memory space> [shape: f32[1], index: 2, kind: input, shape index: {}]
  %s3 = inlined_call_operand.hbm [shape: f32[8,8], index: 3, kind: input, shape index: {}]
  %s4 = inlined_call_operand.vmem [shape: f32[1,8], index: 4, kind: input, shape index: {}]
  %s5 = inlined_call_operand.hbm [shape: f32[2,8], index: 5, kind: output, shape index: {}]
  %s6 = sld [smem:[#allocation0]]
  $region38: #{tpu_custom_call.1} parent=0
    _
  %s8 = ssub.s32 1, %s6
  %s9 = scalar_select 0, %s8, %s6
  %10 = sst [smem:[#allocation2]] %s2
  $region1: #{tpu_custom_call.1} parent=0
    #allocation3 [shape = 'u8[8192]{0}', space=vmem, size = 0x2000, scoped, tag = 'input window, operand 0, single buffered']
    #allocation4 [shape = 's32[1]{0}', space=sflag, size = 0x4, scoped, tag = 'scoped memory for tpu_custom_call.1']
    #allocation5 [shape = 's32[1]{0}', space=sflag, size = 0x4, scoped, tag = 'scoped memory for tpu_custom_call.1']
    #allocation6 [shape = 'u8[4096]{0}', space=vmem, size = 0x1000, scoped, tag = 'input window, operand 3, single buffered']
    #allocation7 [shape = 's32[1]{0}', space=sflag, size = 0x4, scoped, tag = 'scoped memory for tpu_custom_call.1']
    #allocation8 [shape = 'u8[1024]{0}', space=vmem, size = 0x400, scoped, tag = 'output window, operand 0, single buffered']
    %11 = vsyncpa [#allocation4], 0
    %12 = vsyncpa [#allocation7], 0
    %13 = vsyncpa [#allocation5], 0
    // Predicated region
    $region2: #{tpu_custom_call.1} parent=1 // pred_check
      _
    $region3: #{tpu_custom_call.1} parent=1 // pred_check_branch
      %15 = sbr.rel (0) target = $region5
    $region4: #{tpu_custom_call.1} parent=1 // pred_region
      %s17 = ssub.s32 256, 256
      %18 = vsyncadd [#allocation4], %s17
      %s19 = sshll.u32 [#allocation3], 4
      %s20 = int_to_ptr.vmem [resolvable:$true] %s19
      %25 = dma.hbm_to_vmem [thread:$0]  %s0, 256, %s20, [#allocation4], 128, 128, 8
    $region5: #{tpu_custom_call.1} parent=1 // pred_fallthru
      _
    // Predicated region
    $region6: #{tpu_custom_call.1} parent=1 // pred_check
      _
    $region7: #{tpu_custom_call.1} parent=1 // pred_check_branch
      %27 = sbr.rel (0) target = $region9
    $region8: #{tpu_custom_call.1} parent=1 // pred_region
      _
    $region9: #{tpu_custom_call.1} parent=1 // pred_fallthru
      _
    // Predicated region
    $region10: #{tpu_custom_call.1} parent=1 // pred_check
      _
    $region11: #{tpu_custom_call.1} parent=1 // pred_check_branch
      %29 = sbr.rel (0) target = $region13
    $region12: #{tpu_custom_call.1} parent=1 // pred_region
      _
    $region13: #{tpu_custom_call.1} parent=1 // pred_fallthru
      _
    // Predicated region
    $region14: #{tpu_custom_call.1} parent=1 // pred_check
      _
    $region15: #{tpu_custom_call.1} parent=1 // pred_check_branch
      %31 = sbr.rel (0) target = $region17
    $region16: #{tpu_custom_call.1} parent=1 // pred_region
      %s33 = ssub.s32 128, 128
      %34 = vsyncadd [#allocation7], %s33
      %s36 = sshll.u32 [#allocation6], 4
      %s37 = int_to_ptr.vmem [resolvable:$true] %s36
      %39 = dma.hbm_to_vmem [thread:$0]  %s3, 128, %s37, [#allocation7]
    $region17: #{tpu_custom_call.1} parent=1 // pred_fallthru
      _
    // Predicated region
    $region18: #{tpu_custom_call.1} parent=1 // pred_check
      _
    $region19: #{tpu_custom_call.1} parent=1 // pred_check_branch
      %41 = sbr.rel (0) target = $region21
    $region20: #{tpu_custom_call.1} parent=1 // pred_region
      _
    $region21: #{tpu_custom_call.1} parent=1 // pred_fallthru
      _
    // Predicated region
    $region22: #{tpu_custom_call.1} parent=1 // pred_check
      _
    $region23: #{tpu_custom_call.1} parent=1 // pred_check_branch
      %43 = sbr.rel (0) target = $region25
    $region24: #{tpu_custom_call.1} parent=1 // pred_region
      %44 = dma.done [#allocation4], 256
    $region25: #{tpu_custom_call.1} parent=1 // pred_fallthru
      _
    // Predicated region
    $region26: #{tpu_custom_call.1} parent=1 // pred_check
      _
    $region27: #{tpu_custom_call.1} parent=1 // pred_check_branch
      %46 = sbr.rel (0) target = $region29
    $region28: #{tpu_custom_call.1} parent=1 // pred_region
      %47 = dma.done [#allocation7], 128
    $region29: #{tpu_custom_call.1} parent=1 // pred_fallthru
      _
    %v48 = vld [vmem:[#allocation3] sm:$0xff]
    %v49 = vld [vmem:[#allocation3 + $0x8] sm:$0xff]
    %v50 = vld [vmem:[%s1] sm:$0x1]
    %v51 = vlaneseq
    %v52 = vshrl.u32 %v51, 7
    %v53 = vsub.s32 0, %v52
    %v54 = vrot.slane %v50, %v53
    %56 = vbcast.lane.b32.xlu0 %v54, 256
    %v57 = vpop.permute.xlu0 %56
    %v58 = vmul.f32 %v48, %v57
    %v59 = vmul.f32 %v49, %v57
    %vm60 = vcmask 130048
    %v61 = vsel %vm60, %v58, 0.0
    %v62 = vrot.slane %v61, 4
    %v63 = vadd.f32 %v61, %v62
    %v64 = vrot.slane %v63, 2
    %v65 = vadd.f32 %v63, %v64
    %v66 = vrot.slane %v65, 1
    %v67 = vadd.f32 %v65, %v66
    %v68 = vsel %vm60, %v59, 0.0
    %v69 = vrot.slane %v68, 4
    %v70 = vadd.f32 %v68, %v69
    %v71 = vrot.slane %v70, 2
    %v72 = vadd.f32 %v70, %v71
    %v73 = vrot.slane %v72, 1
    %v74 = vadd.f32 %v72, %v73
    %s75 = sld [smem:[#allocation2]]
    %v76 = vstv %s75
    %v77 = vadd.f32 %v67, %v76
    %v78 = vadd.f32 %v74, %v76
    %vm81 = vcmask 1041409
    %v82 = vsel %vm81, %v78, %v77
    %vm84 = vcmask 123904
    %v85 = vsel %vm84, %v82, -inf
    %86 = vmax.xlane.f32.xlu0 %v85
    %v87 = vpop.xlane.xlu0 %86
    %v89 = vrot.slane %v87, 1
    %v92 = vsub.f32 %v77, %v87
    %v93 = vsub.f32 %v78, %v89
    %v94 = vmul.f32 %v92, 1.442695
    %v95 = vpow.pop %v94
    %v96 = vmul.f32 %v93, 1.442695
    %v97 = vpow.pop %v96
    %v100 = vrot.slane %v97, 7
    %v101 = vsel %vm81, %v100, %v95
    %v103 = vsel %vm84, %v101, 0.0
    %104 = vadd.xlane.f32.xlu0 %v103
    %v105 = vpop.xlane.xlu0 %104
    %v106 = vrcp.pop %v105
    %v108 = vrot.slane %v106, 1
    %v111 = vmul.f32 %v95, %v106
    %v112 = vmul.f32 %v97, %v108
    %v113 = vlaneseq
    %v114 = vshrl.u32 %v113, 7
    %v115 = vsub.s32 0, %v114
    %v116 = vrot.slane %v111, %v115
    %v117 = vlaneseq
    %v118 = vshrl.u32 %v117, 7
    %v119 = vsub.s32 0, %v118
    %v120 = vrot.slane %v112, %v119
    %v121 = vmul.f32 %v48, %v116
    %v122 = vmul.f32 %v49, %v120
    %v123 = vsel %vm60, %v121, 0.0
    %124 = vadd.xlane.f32.xlu0 %v123
    %v125 = vpop.xlane.xlu0 %124
    %v126 = vsel %vm60, %v122, 0.0
    %127 = vadd.xlane.f32.xlu0 %v126
    %v128 = vpop.xlane.xlu0 %127
    %v129 = vld [vmem:[#allocation6] sm:$0xff]
    %v130 = vld [vmem:[%s4] sm:$0x1]
    %v132 = vlaneseq
    %v133 = vshrl.u32 %v132, 7
    %v134 = vsub.s32 0, %v133
    %v135 = vrot.slane %v130, %v134
    %v139 = vlaneseq
    %v140 = vand.u32 %v139, 127
    %v141 = vlaneseq
    %v142 = vshrl.u32 %v141, 7
    %v143 = vsub.s32 %v140, %v142
    %v144 = vrot.slane %v125, %v143
    %v145 = vlaneseq
    %v146 = vshrl.u32 %v145, 7
    %v147 = vsub.s32 %v140, %v146
    %v148 = vrot.slane %v128, %v147
    %v149 = vsel %vm81, %v148, %v144
    %vm150 = vcmask 64512
    %v151 = vsel %vm150, %v149, 0
    %153 = vmatprep.subr.mxu0 0.0
    %154 = vmatpush1.msra.mxu0 0.0
    %155 = vmatprep.subr.mxu0 0.0
    %156 = vmatpush1.msra.mxu0 0.0
    %157 = vmatprep.subr.mxu0 0.0
    %158 = vmatpush1.msra.mxu0 0.0
    %159 = vmatprep.subr.mxu0 0.0
    %160 = vmatpush1.msra.mxu0 0.0
    %161 = vmatprep.subr.mxu0 0.0
    %162 = vmatpush1.msra.mxu0 0.0
    %163 = vmatprep.subr.mxu0 0.0
    %164 = vmatpush1.msra.mxu0 0.0
    %165 = vmatprep.subr.mxu0 0.0
    %166 = vmatpush1.msra.mxu0 0.0
    %167 = vmatprep.subr.mxu0 0.0
    %168 = vmatpush1.msra.mxu0 0.0
    %169 = vmatprep.subr.mxu0 0.0
    %170 = vmatpush1.msra.mxu0 0.0
    %171 = vmatprep.subr.mxu0 0.0
    %172 = vmatpush1.msra.mxu0 0.0
    %173 = vmatprep.subr.mxu0 0.0
    %174 = vmatpush1.msra.mxu0 0.0
    %175 = vmatprep.subr.mxu0 0.0
    %176 = vmatpush1.msra.mxu0 0.0
    %177 = vmatprep.subr.mxu0 0.0
    %178 = vmatpush1.msra.mxu0 0.0
    %179 = vmatprep.subr.mxu0 0.0
    %180 = vmatpush1.msra.mxu0 0.0
    %181 = vmatprep.subr.mxu0 0.0
    %182 = vmatpush1.msra.mxu0 0.0
    %183 = vmatprep.subr.mxu0 0.0
    %184 = vmatpush1.msra.mxu0 %v129
    %185 = vmatprep.subr.mxu0 0.0
    %186 = vmatpush2.msra.mxu0 0.0
    %187 = vmatprep.subr.mxu0 0.0
    %188 = vmatpush2.msra.mxu0 0.0
    %189 = vmatprep.subr.mxu0 0.0
    %190 = vmatpush2.msra.mxu0 0.0
    %191 = vmatprep.subr.mxu0 0.0
    %192 = vmatpush2.msra.mxu0 0.0
    %193 = vmatprep.subr.mxu0 0.0
    %194 = vmatpush2.msra.mxu0 0.0
    %195 = vmatprep.subr.mxu0 0.0
    %196 = vmatpush2.msra.mxu0 0.0
    %197 = vmatprep.subr.mxu0 0.0
    %198 = vmatpush2.msra.mxu0 0.0
    %199 = vmatprep.subr.mxu0 0.0
    %200 = vmatpush2.msra.mxu0 0.0
    %201 = vmatprep.subr.mxu0 0.0
    %202 = vmatpush2.msra.mxu0 0.0
    %203 = vmatprep.subr.mxu0 0.0
    %204 = vmatpush2.msra.mxu0 0.0
    %205 = vmatprep.subr.mxu0 0.0
    %206 = vmatpush2.msra.mxu0 0.0
    %207 = vmatprep.subr.mxu0 0.0
    %208 = vmatpush2.msra.mxu0 0.0
    %209 = vmatprep.subr.mxu0 0.0
    %210 = vmatpush2.msra.mxu0 0.0
    %211 = vmatprep.subr.mxu0 0.0
    %212 = vmatpush2.msra.mxu0 0.0
    %213 = vmatprep.subr.mxu0 0.0
    %214 = vmatpush2.msra.mxu0 0.0
    %215 = vmatprep.subr.mxu0 0.0
    %216 = vmatpush2.msra.mxu0 0.0
    %217 = vmatprep.mubr.f32.mxu0 0.0
    %218 = vmatmul.mubr.f32.gmra.mxu0 %v151
    %v219 = vpop.f32.mrf.mxu0
    %v220 = vadd.f32 %v135, %v219
    %v221 = vpop.f32.mrf.mxu0
    %222 = vdwg.mxu0
    %vm223 = vcmask 58368
    %224 = vst.msk [vmem:[#allocation8] sm:$0x3] %vm223, %v220
    // Predicated region
    $region30: #{tpu_custom_call.1} parent=1 // pred_check
      _
    $region31: #{tpu_custom_call.1} parent=1 // pred_check_branch
      %226 = sbr.rel (0) target = $region33
    $region32: #{tpu_custom_call.1} parent=1 // pred_region
      %s228 = ssub.s32 32, 32
      %229 = vsyncadd [#allocation5], %s228
      %s231 = sshll.u32 [#allocation8], 4
      %s232 = int_to_ptr.vmem [resolvable:$true] %s231
      %234 = dma.vmem_to_hbm [thread:$0]  %s232, 32, %s5, [#allocation5]
    $region33: #{tpu_custom_call.1} parent=1 // pred_fallthru
      _
    // Predicated region
    $region34: #{tpu_custom_call.1} parent=1 // pred_check
      _
    $region35: #{tpu_custom_call.1} parent=1 // pred_check_branch
      %236 = sbr.rel (0) target = $region37
    $region36: #{tpu_custom_call.1} parent=1 // pred_region
      %237 = dma.done [#allocation5], 32
    $region37: #{tpu_custom_call.1} parent=1 // pred_fallthru
      _
    %238 = vsyncpa [#allocation4], 1
    %239 = vsyncpa [#allocation7], 1
    %240 = vsyncpa [#allocation5], 1

</llo_original>
